<compile_context>
chip_gen: v7x
topology: tpu7x:2x2x1
jax: 0.10.0
libtpu: 0.0.40
codegen_flags: <defaults>
</compile_context>

<pallas_src>
import functools

import jax
import jax.numpy as jnp
import numpy as np
from jax.experimental import pallas as pl
from jax.experimental.pallas import tpu as pltpu


# ----------------------------------------------------------------------------
# Parameter setup (plain JAX glue): build the sin/cos positional table once.
# ----------------------------------------------------------------------------
def make_pe_table(d_model: int, max_len: int = 5000) -> jnp.ndarray:
    # Same construction (and same even-d_model assumption) as the PyTorch module.
    assert d_model % 2 == 0, "d_model must be even (matches the PyTorch snippet)"
    position = jnp.arange(0, max_len, dtype=jnp.float32)[:, None]            # (L, 1)
    div_term = jnp.power(
        10000.0, jnp.arange(0, d_model, 2, dtype=jnp.float32) / d_model
    )                                                                         # (D/2,)
    angles = position / div_term[None, :]                                     # (L, D/2)
    pe = jnp.zeros((max_len, d_model), dtype=jnp.float32)
    pe = pe.at[:, 0::2].set(jnp.sin(angles))
    pe = pe.at[:, 1::2].set(jnp.cos(angles))
    return pe


# ----------------------------------------------------------------------------
# Tile-size selection.
# ----------------------------------------------------------------------------
_VMEM_LIMIT_BYTES = 40 * 1024 * 1024   # scoped VMEM request (safe on v5e/v6e/v7x)
_TILE_BUDGET_BYTES = 16 * 1024 * 1024  # double-buffered x-in + out + pe tiles
_MIN_PROGRAMS = 4                      # feed both v7x TensorCores (>= 2 tiles each)
_MIN_TS_FOR_SPLIT = 256                # >=256-row tiles already sit near HBM roofline


def _round_up(x: int, m: int) -> int:
    return ((x + m - 1) // m) * m


def _choose_tiles(S: int, B: int, D: int, itemsize: int) -> tuple[int, int]:
    """Returns (tS, nb): seq rows per block and batch elements folded per block."""
    nb = B                                    # full batch on lanes -> contiguous DMA
    tS = min(_round_up(S, 8), 2048)

    def tile_bytes(ts: int, n: int) -> int:
        x_tile = ts * n * D * itemsize
        pe_tile = ts * D * itemsize
        return 2 * (2 * x_tile + pe_tile)     # 2x for double-buffering (in + out + pe)

    # Fit VMEM: shrink the seq tile first (keeps each DMA row fully contiguous
    # in HBM), only then narrow the batch-group lane width.
    while tile_bytes(tS, nb) > _TILE_BUDGET_BYTES and tS > 8:
        tS = max(8, _round_up(tS // 2, 8))
    while (
        tile_bytes(tS, nb) > _TILE_BUDGET_BYTES
        and nb > 1
        and ((nb // 2) * D) % 128 == 0        # keep lane blocks 128-aligned
    ):
        nb = nb // 2

    # Megacore: make sure the parallel grid has enough programs to shard across
    # both v7x TensorCores, without dropping below near-roofline tile sizes.
    while pl.cdiv(S, tS) * pl.cdiv(B, nb) < _MIN_PROGRAMS and tS > _MIN_TS_FOR_SPLIT:
        tS = max(_MIN_TS_FOR_SPLIT, _round_up(tS // 2, 8))

    return tS, nb


# ----------------------------------------------------------------------------
# Pallas kernel: elementwise add of the pe tile onto one (tS, nb*D) slab.
# ----------------------------------------------------------------------------
def pos_enc_kernel(x_ref, pe_ref, o_ref, *, nb: int):
    # x_ref / o_ref: (tS, nb*D)  -- seq on sublanes, (batch-group, d_model) on lanes.
    # pe_ref:        (tS, D)     -- identical (sublane, lane) layout as each batch slab.
    pe = pe_ref[...]
    if nb > 1:
        # Static, lane-aligned replication of pe across the nb batch columns
        # (a few vreg copies; no sublane broadcast / relayout).
        pe = jnp.concatenate([pe] * nb, axis=-1)
    o_ref[...] = x_ref[...] + pe


def positional_encoding_forward(x: jnp.ndarray, pe: jnp.ndarray) -> jnp.ndarray:
    """x: (S, B, D) float dtype; pe: (max_len, D) float32 table (max_len >= S)."""
    S, B, D = x.shape
    max_len, d_model = pe.shape
    assert d_model == D, "pe table d_model mismatch"
    assert max_len >= S, "sequence longer than positional table"

    # Native-dtype add (bf16 on v6e/v7x halves pe DMA and vreg traffic; for f32
    # this is a no-op). Note: output keeps x.dtype (bf16 inputs round slightly
    # differently than an f32-add-then-cast path).
    pe = pe.astype(x.dtype)
    # Zero-copy view: fold (batch, d_model) into the lane axis.
    x2 = x.reshape(S, B * D)

    tS, nb = _choose_tiles(S, B, D, x.dtype.itemsize)
    grid = (pl.cdiv(S, tS), pl.cdiv(B, nb))   # batch-group innermost -> pe block resident

    bytes_accessed = 2 * x.size * x.dtype.itemsize + S * D * x.dtype.itemsize
    cost = pl.CostEstimate(flops=x.size, transcendentals=0, bytes_accessed=bytes_accessed)

    out2 = pl.pallas_call(
        functools.partial(pos_enc_kernel, nb=nb),
        out_shape=jax.ShapeDtypeStruct((S, B * D), x.dtype),
        grid=grid,
        in_specs=[
            # x: seq-tiled, nb*D lanes per block (fully contiguous when nb == B).
            pl.BlockSpec((tS, nb * D), lambda i, j: (i, j)),
            # pe: full table passed in; block index ignores the batch-group grid
            # axis, so the same (tS, D) block stays resident across it.
            pl.BlockSpec((tS, D), lambda i, j: (i, 0)),
        ],
        out_specs=pl.BlockSpec((tS, nb * D), lambda i, j: (i, j)),
        compiler_params=pltpu.CompilerParams(
            dimension_semantics=("parallel", "parallel"),
            vmem_limit_bytes=_VMEM_LIMIT_BYTES,
        ),
        cost_estimate=cost,
        # In-place add into x's HBM buffer (XLA copies first if x is still live).
        input_output_aliases={0: 0},
    )(x2, pe)

    return out2.reshape(S, B, D)


if __name__ == "__main__":
    # Small shapes consistent with the module: seq=8, batch=2, d_model=128.
    S, B, D = 8, 2, 128
    max_len = 64  # smaller table for the demo; same construction as max_len=5000

    key = jax.random.PRNGKey(0)
    x = jax.random.normal(key, (S, B, D), dtype=jnp.float32)

    pe = make_pe_table(D, max_len)

    # Reference (pure JAX, mirrors the PyTorch forward); computed before the
    # aliased kernel call so the check is independent of in-place behavior.
    ref = x + pe[:S][:, None, :]

    out = positional_encoding_forward(x, pe)
    out = jax.block_until_ready(out)

    assert out.shape == (S, B, D)
    assert out.dtype == x.dtype
    np.testing.assert_allclose(np.asarray(out), np.asarray(ref), rtol=1e-6, atol=1e-6)

    print("KERNEL_OK")
</pallas_src>

<mosaic_0001>
module attributes {stable_mosaic.version = 11 : i64} {
  func.func @pos_enc_kernel(%arg0: i32, %arg1: i32, %arg2: memref<8x256xf32, #tpu.memory_space<vmem>>, %arg3: memref<8x128xf32, #tpu.memory_space<vmem>>, %arg4: memref<8x256xf32, #tpu.memory_space<vmem>>) attributes {dimension_semantics = [#tpu.dimension_semantics<parallel>, #tpu.dimension_semantics<parallel>], iteration_bounds = array<i64: 1, 1>, scalar_prefetch = 0 : i64, scratch_operands = 0 : i64, tpu.core_type = #tpu.core_type<tc>, window_params = [{transform_indices = @transform_0, window_bounds = array<i64: 8, 256>}, {transform_indices = @transform_1, window_bounds = array<i64: 8, 128>}, {transform_indices = @transform_2, window_bounds = array<i64: 8, 256>}]} {
    %c0 = arith.constant 0 : index
    %c0_0 = arith.constant 0 : index
    %0 = vector.load %arg3[%c0, %c0_0] : memref<8x128xf32, #tpu.memory_space<vmem>>, vector<8x128xf32>
    %1 = tpu.concatenate %0, %0 in 1 : vector<8x128xf32>, vector<8x128xf32> -> vector<8x256xf32>
    %c0_1 = arith.constant 0 : index
    %c0_2 = arith.constant 0 : index
    %2 = vector.load %arg2[%c0_1, %c0_2] : memref<8x256xf32, #tpu.memory_space<vmem>>, vector<8x256xf32>
    %3 = arith.addf %2, %1 : vector<8x256xf32>
    %c0_3 = arith.constant 0 : index
    %c0_4 = arith.constant 0 : index
    %4 = vector.load %arg4[%c0_3, %c0_4] : memref<8x256xf32, #tpu.memory_space<vmem>>, vector<8x256xf32>
    tpu.vector_store %arg4[%c0_3, %c0_4], %3 {strides = array<i32>} : memref<8x256xf32, #tpu.memory_space<vmem>>, vector<8x256xf32>,
    return
  }
  func.func @transform_0(%arg0: i32, %arg1: i32) -> (i32, i32) {
    %c0_i32 = arith.constant 0 : i32
    return %arg0, %arg1 : i32, i32
  }
  func.func @transform_1(%arg0: i32, %arg1: i32) -> (i32, i32) {
    %c0_i32 = arith.constant 0 : i32
    %c0_i32_0 = arith.constant 0 : i32
    return %arg0, %c0_i32 : i32, i32
  }
  func.func @transform_2(%arg0: i32, %arg1: i32) -> (i32, i32) {
    %c0_i32 = arith.constant 0 : i32
    return %arg0, %arg1 : i32, i32
  }
}

</mosaic_0001>

<llo_original>
// kernel: tpu_custom_call.1
$region0: #{tpu_custom_call.1}
  #allocation0 [shape = 'u32[]', space=smem, size = 0x4, offset = 0x4, fixed_abs, tag = 'smem constant byte address 0x4 - core index']
  #allocation1 [shape = 'u32[144,128]{1,0:T(1,128)}', space=vmem, size = 0x12000, scoped, tag = 'internal scratch']
  %s0 = inlined_call_operand.hbm [shape: f32[8,256], index: 0, kind: input, shape index: {}, may-alias: {0,2}]
  %s1 = inlined_call_operand.hbm [shape: f32[64,128], index: 1, kind: input, shape index: {}]
  %s2 = inlined_call_operand.hbm [shape: f32[8,256], index: 2, kind: output, shape index: {}, may-alias: {0,2}]
  %s3 = sld [smem:[#allocation0]]
  $region26: #{tpu_custom_call.1} parent=0
    _
  %s5 = ssub.s32 1, %s3
  %s6 = scalar_select 0, %s5, %s3
  $region1: #{tpu_custom_call.1} parent=0
    #allocation2 [shape = 'u8[8192]{0}', space=vmem, size = 0x2000, scoped, tag = 'input window, operand 0, single buffered']
    #allocation3 [shape = 's32[1]{0}', space=sflag, size = 0x4, scoped, tag = 'scoped memory for tpu_custom_call.1']
    #allocation4 [shape = 's32[1]{0}', space=sflag, size = 0x4, scoped, tag = 'scoped memory for tpu_custom_call.1']
    #allocation5 [shape = 'u8[4096]{0}', space=vmem, size = 0x1000, scoped, tag = 'input window, operand 1, single buffered']
    #allocation6 [shape = 's32[1]{0}', space=sflag, size = 0x4, scoped, tag = 'scoped memory for tpu_custom_call.1']
    #allocation7 [shape = 'u8[8192]{0}', space=vmem, size = 0x2000, scoped, tag = 'output window, operand 0, single buffered']
    %7 = vsyncpa [#allocation3], 0
    %8 = vsyncpa [#allocation6], 0
    %9 = vsyncpa [#allocation4], 0
    // Predicated region
    $region2: #{tpu_custom_call.1} parent=1 // pred_check
      _
    $region3: #{tpu_custom_call.1} parent=1 // pred_check_branch
      %11 = sbr.rel (0) target = $region5
    $region4: #{tpu_custom_call.1} parent=1 // pred_region
      %s13 = ssub.s32 256, 256
      %14 = vsyncadd [#allocation3], %s13
      %s16 = sshll.u32 [#allocation2], 4
      %s17 = int_to_ptr.vmem [resolvable:$true] %s16
      %19 = dma.hbm_to_vmem [thread:$0]  %s0, 256, %s17, [#allocation3]
    $region5: #{tpu_custom_call.1} parent=1 // pred_fallthru
      _
    // Predicated region
    $region6: #{tpu_custom_call.1} parent=1 // pred_check
      _
    $region7: #{tpu_custom_call.1} parent=1 // pred_check_branch
      %21 = sbr.rel (0) target = $region9
    $region8: #{tpu_custom_call.1} parent=1 // pred_region
      %s23 = ssub.s32 128, 128
      %24 = vsyncadd [#allocation6], %s23
      %s26 = sshll.u32 [#allocation5], 4
      %s27 = int_to_ptr.vmem [resolvable:$true] %s26
      %29 = dma.hbm_to_vmem [thread:$0]  %s1, 128, %s27, [#allocation6]
    $region9: #{tpu_custom_call.1} parent=1 // pred_fallthru
      _
    // Predicated region
    $region10: #{tpu_custom_call.1} parent=1 // pred_check
      _
    $region11: #{tpu_custom_call.1} parent=1 // pred_check_branch
      %31 = sbr.rel (0) target = $region13
    $region12: #{tpu_custom_call.1} parent=1 // pred_region
      %32 = dma.done [#allocation3], 256
    $region13: #{tpu_custom_call.1} parent=1 // pred_fallthru
      _
    // Predicated region
    $region14: #{tpu_custom_call.1} parent=1 // pred_check
      _
    $region15: #{tpu_custom_call.1} parent=1 // pred_check_branch
      %34 = sbr.rel (0) target = $region17
    $region16: #{tpu_custom_call.1} parent=1 // pred_region
      %35 = dma.done [#allocation6], 128
    $region17: #{tpu_custom_call.1} parent=1 // pred_fallthru
      _
    %v36 = vld [vmem:[#allocation5] sm:$0xff]
    %v37 = vld [vmem:[#allocation2] sm:$0xff]
    %v38 = vld [vmem:[#allocation2 + $0x8] sm:$0xff]
    %v39 = vadd.f32 %v37, %v36
    %v40 = vadd.f32 %v38, %v36
    %41 = vst [vmem:[#allocation7] sm:$0xff] %v39
    %42 = vst [vmem:[#allocation7 + $0x8] sm:$0xff] %v40
    // Predicated region
    $region18: #{tpu_custom_call.1} parent=1 // pred_check
      _
    $region19: #{tpu_custom_call.1} parent=1 // pred_check_branch
      %44 = sbr.rel (0) target = $region21
    $region20: #{tpu_custom_call.1} parent=1 // pred_region
      %s46 = ssub.s32 256, 256
      %47 = vsyncadd [#allocation4], %s46
      %s49 = sshll.u32 [#allocation7], 4
      %s50 = int_to_ptr.vmem [resolvable:$true] %s49
      %52 = dma.vmem_to_hbm [thread:$0]  %s50, 256, %s2, [#allocation4]
    $region21: #{tpu_custom_call.1} parent=1 // pred_fallthru
      _
    // Predicated region
    $region22: #{tpu_custom_call.1} parent=1 // pred_check
      _
    $region23: #{tpu_custom_call.1} parent=1 // pred_check_branch
      %54 = sbr.rel (0) target = $region25
    $region24: #{tpu_custom_call.1} parent=1 // pred_region
      %55 = dma.done [#allocation4], 256
    $region25: #{tpu_custom_call.1} parent=1 // pred_fallthru
      _
    %56 = vsyncpa [#allocation3], 1
    %57 = vsyncpa [#allocation6], 1
    %58 = vsyncpa [#allocation4], 1

</llo_original>
